<compile_context>
chip_gen: v6e
topology: v6e:2x2x1
jax: 0.10.0
libtpu: 0.0.40
codegen_flags: <defaults>
</compile_context>

<pallas_src>
import functools

import jax
import jax.numpy as jnp
from jax.experimental import pallas as pl
from jax.experimental.pallas import tpu as pltpu

BN_EPS = 1e-5
_Y_DTYPE = jnp.bfloat16   # conv-output intermediate; stats stay f32


# ---------------------------------------------------------------------------
# Pass 1: conv matmul (MXU) + per-(n, channel) sum / sum-of-squares
# ---------------------------------------------------------------------------
def _conv_stats_kernel(w_ref, p_ref, y_ref, sum_ref, sq_ref):
    # w_ref:   (C_out, K)        bf16, resident (constant index map)
    # p_ref:   (1, K, tile_m)    bf16
    # y_ref:   (1, C_out, tile_m) bf16
    # sum/sq:  (1, C_out, 1)      f32, resident per-n accumulators
    mb = pl.program_id(1)

    @pl.when(mb == 0)
    def _():
        sum_ref[...] = jnp.zeros_like(sum_ref)
        sq_ref[...] = jnp.zeros_like(sq_ref)

    y = jnp.dot(w_ref[...], p_ref[0], preferred_element_type=jnp.float32)
    y_ref[0] = y.astype(y_ref.dtype)
    # Cross-lane reduction rides the XLU slot; hidden behind the matmul unless
    # K is very small (thin convs).
    sum_ref[...] += jnp.sum(y, axis=1, keepdims=True)[None]
    sq_ref[...] += jnp.sum(y * y, axis=1, keepdims=True)[None]


# ---------------------------------------------------------------------------
# Pass 2: fused normalize (+ optional skip) + activation, layout-native
# ---------------------------------------------------------------------------
def _norm_act_kernel(y_ref, scale_ref, shift_ref, *rest,
                     use_activation, leaky_relu, has_skip):
    if has_skip:
        skip_ref, o_ref = rest
    else:
        (o_ref,) = rest
    y = y_ref[0].astype(jnp.float32) * scale_ref[...] + shift_ref[...]
    if has_skip:
        y = y + skip_ref[0].astype(jnp.float32)
    if use_activation:
        y = jnp.where(y > 0, y, 0.2 * y) if leaky_relu else jnp.maximum(y, 0.0)
    o_ref[0] = y.astype(o_ref.dtype)


# ---------------------------------------------------------------------------
# Host-side glue
# ---------------------------------------------------------------------------
def _im2col(x, kh, kw, stride, pad, reflect):
    """x: (N, C, H, W) -> patches (N, C*kh*kw, Ho*Wo)  (lane-dense per batch)."""
    if pad > 0:
        mode = "reflect" if reflect else "constant"
        x = jnp.pad(x, ((0, 0), (0, 0), (pad, pad), (pad, pad)), mode=mode)
    N, C, Hp, Wp = x.shape
    Ho = (Hp - kh) // stride + 1
    Wo = (Wp - kw) // stride + 1
    cols = []
    for i in range(kh):
        for j in range(kw):
            cols.append(x[:, :, i:i + (Ho - 1) * stride + 1:stride,
                              j:j + (Wo - 1) * stride + 1:stride])  # (N,C,Ho,Wo)
    patches = jnp.stack(cols, axis=2)                  # (N, C, kh*kw, Ho, Wo)
    patches = patches.reshape(N, C * kh * kw, Ho * Wo)
    return patches, Ho, Wo


def _vmem_budgets():
    """(tile-sizing budget, scoped vmem_limit_bytes), derived from the chip."""
    try:
        cap = int(pltpu.get_tpu_info().vmem_capacity_bytes)
    except Exception:                 # emulator / older jax: assume v7x (64 MiB)
        cap = 64 << 20
    tile_budget = max(min(int(cap * 0.60), 80 << 20), 16 << 20)
    vmem_limit = max(min(int(cap * 0.85), 112 << 20), 32 << 20)
    return tile_budget, vmem_limit


def _pick_tile_m(m, k, c_out, budget_bytes, *, y_bytes=2, skip_bytes=4, cap=8192):
    """Largest lane tile (multiple of 128, <= cap) fitting the VMEM budget.

    Returns (tile_m, m_padded) with tile_m dividing m_padded, so every grid
    step is a full tile and the pipelined path is always used.
    """
    m128 = ((m + 127) // 128) * 128
    fixed = 2 * c_out * k * 2                                # bf16 weights, 2 buffers
    per_col = 2 * max(2 * k + y_bytes * c_out,               # pass 1: patches + y
                      (y_bytes + skip_bytes + 4) * c_out)    # pass 2: y + skip + out
    limit = (budget_bytes - fixed) // max(per_col, 1)
    limit = max(128, min(cap, (limit // 128) * 128))
    if m128 <= limit:
        return m128, m128
    t = limit
    while t >= 128:
        if m128 % t == 0:
            return t, m128
        t -= 128
    return 128, m128


def conv_block(x, weight, bias, gamma, beta, *, stride=1, padding=1,
               reflection_pad=True, skip_block_output=None,
               use_activation=True, leaky_relu=False):
    """Forward of ConvBlock (upsample=False, train-mode BatchNorm)."""
    N, C_in, H, W = x.shape
    C_out, c_in_w, kh, kw = weight.shape
    assert c_in_w == C_in

    # bf16 BEFORE im2col: the replicated patches intermediate is half the bytes.
    patches, Ho, Wo = _im2col(x.astype(jnp.bfloat16), kh, kw, stride, padding,
                              reflection_pad)
    _, K, M = patches.shape

    tile_budget, vmem_limit = _vmem_budgets()
    tile_m, m_pad = _pick_tile_m(M, K, C_out, tile_budget)
    if m_pad != M:  # zero columns -> zero conv output -> no effect on BN stats
        patches = jnp.pad(patches, ((0, 0), (0, 0), (0, m_pad - M)))
    grid = (N, m_pad // tile_m)

    w2d = weight.reshape(C_out, K).astype(jnp.bfloat16)

    # ---- pass 1: conv matmul + per-(n, channel) partial BN stats ------------
    y3d, ssum, ssq = pl.pallas_call(
        _conv_stats_kernel,
        out_shape=(jax.ShapeDtypeStruct((N, C_out, m_pad), _Y_DTYPE),
                   jax.ShapeDtypeStruct((N, C_out, 1), jnp.float32),
                   jax.ShapeDtypeStruct((N, C_out, 1), jnp.float32)),
        grid=grid,
        in_specs=[pl.BlockSpec((C_out, K), lambda n, mb: (0, 0)),
                  pl.BlockSpec((1, K, tile_m), lambda n, mb: (n, 0, mb))],
        out_specs=(pl.BlockSpec((1, C_out, tile_m), lambda n, mb: (n, 0, mb)),
                   pl.BlockSpec((1, C_out, 1), lambda n, mb: (n, 0, 0)),
                   pl.BlockSpec((1, C_out, 1), lambda n, mb: (n, 0, 0))),
        compiler_params=pltpu.CompilerParams(
            # batch axis is independent (per-n partial stats) -> shards across
            # the 2 TCs on v7x; the lane-tile axis carries the accumulators.
            dimension_semantics=("parallel", "arbitrary"),
            vmem_limit_bytes=vmem_limit),
    )(w2d, patches)

    # ---- fold train-mode BN into one per-channel scale/shift (tiny JAX) -----
    # NOTE: the Conv2d bias cancels exactly under training-mode BatchNorm (the
    # per-channel mean subtraction removes it), so it is never added.  If this
    # kernel is reused with eval-mode running stats, the bias must be restored.
    del bias
    m_true = jnp.float32(N * Ho * Wo)
    mean = ssum.sum(axis=0) / m_true                               # (C_out, 1)
    var = jnp.maximum(ssq.sum(axis=0) / m_true - mean * mean, 0.0)
    inv_std = jax.lax.rsqrt(var + BN_EPS)
    scale = gamma.astype(jnp.float32).reshape(C_out, 1) * inv_std
    shift = beta.astype(jnp.float32).reshape(C_out, 1) - mean * scale

    # ---- pass 2: normalize (+skip) + activation ------------------------------
    has_skip = skip_block_output is not None
    inputs = [y3d, scale, shift]
    in_specs = [pl.BlockSpec((1, C_out, tile_m), lambda n, mb: (n, 0, mb)),
                pl.BlockSpec((C_out, 1), lambda n, mb: (0, 0)),
                pl.BlockSpec((C_out, 1), lambda n, mb: (0, 0))]
    if has_skip:
        assert skip_block_output.shape == (N, C_out, Ho, Wo)
        skip3d = skip_block_output.reshape(N, C_out, Ho * Wo)     # free reshape
        if m_pad != M:
            skip3d = jnp.pad(skip3d, ((0, 0), (0, 0), (0, m_pad - M)))
        inputs.append(skip3d)
        in_specs.append(pl.BlockSpec((1, C_out, tile_m), lambda n, mb: (n, 0, mb)))

    kernel2 = functools.partial(_norm_act_kernel, use_activation=use_activation,
                                leaky_relu=leaky_relu, has_skip=has_skip)

    out3d = pl.pallas_call(
        kernel2,
        out_shape=jax.ShapeDtypeStruct((N, C_out, m_pad), jnp.float32),
        grid=grid,
        in_specs=in_specs,
        out_specs=pl.BlockSpec((1, C_out, tile_m), lambda n, mb: (n, 0, mb)),
        compiler_params=pltpu.CompilerParams(
            dimension_semantics=("parallel", "parallel"),
            vmem_limit_bytes=vmem_limit),
    )(*inputs)

    if m_pad != M:
        out3d = out3d[:, :, :M]
    return out3d.reshape(N, C_out, Ho, Wo)     # free reshape, no transpose


# ---------------------------------------------------------------------------
# Pure-JAX reference (module semantics)
# ---------------------------------------------------------------------------
def _reference(x, weight, bias, gamma, beta, *, stride, padding,
               skip_block_output=None, use_activation=True, leaky_relu=False,
               match_kernel=False):
    xp = jnp.pad(x, ((0, 0), (0, 0), (padding, padding), (padding, padding)),
                 mode="reflect")
    w = weight
    if match_kernel:   # mirror the kernel's bf16 MXU operands (f32 accumulation)
        xp = xp.astype(jnp.bfloat16).astype(jnp.float32)
        w = w.astype(jnp.bfloat16).astype(jnp.float32)
    y = jax.lax.conv_general_dilated(
        xp, w, (stride, stride), "VALID",
        dimension_numbers=("NCHW", "OIHW", "NCHW"))
    if not match_kernel:
        # bias cancels under train-mode BN; the kernel never adds it.
        y = y + bias[None, :, None, None]
    mean = y.mean(axis=(0, 2, 3), keepdims=True)
    var = ((y - mean) ** 2).mean(axis=(0, 2, 3), keepdims=True)
    if match_kernel:   # kernel stores the conv output in bf16 (after f32 stats)
        y = y.astype(jnp.bfloat16).astype(jnp.float32)
    y = (y - mean) * jax.lax.rsqrt(var + BN_EPS)
    y = y * gamma[None, :, None, None] + beta[None, :, None, None]
    if skip_block_output is not None:
        y = y + skip_block_output
    if use_activation:
        y = jnp.where(y > 0, y, 0.2 * y) if leaky_relu else jnp.maximum(y, 0.0)
    return y


if __name__ == "__main__":
    # ConvBlock(in_channels=4, out_channels=8, kernel_size=3, padding=1)
    N, C_in, H, W = 2, 4, 16, 16
    C_out, ksize, stride, pad = 8, 3, 1, 1

    key = jax.random.PRNGKey(0)
    kx, kw_, kb, kg, kbe, ks = jax.random.split(key, 6)
    x = jax.random.normal(kx, (N, C_in, H, W), jnp.float32)
    weight = jax.random.normal(kw_, (C_out, C_in, ksize, ksize), jnp.float32) * 0.1
    bias = jax.random.normal(kb, (C_out,), jnp.float32) * 0.1
    gamma = 1.0 + 0.1 * jax.random.normal(kg, (C_out,), jnp.float32)
    beta = 0.1 * jax.random.normal(kbe, (C_out,), jnp.float32)
    skip = jax.random.normal(ks, (N, C_out, H, W), jnp.float32) * 0.1

    # Tolerances: the bf16-stored conv intermediate means accumulation-order
    # differences can flip a single bf16 ulp (~0.8% of |y|) on rare elements,
    # so the "precision-matched" check uses 2e-2 rather than 2e-3.
    # Variant 1: skip connection + ReLU
    out = conv_block(x, weight, bias, gamma, beta, stride=stride, padding=pad,
                     skip_block_output=skip)
    out = jax.block_until_ready(out)
    assert out.shape == (N, C_out, H, W)

    ref_matched = _reference(x, weight, bias, gamma, beta, stride=stride,
                             padding=pad, skip_block_output=skip,
                             match_kernel=True)
    ref_f32 = _reference(x, weight, bias, gamma, beta, stride=stride,
                         padding=pad, skip_block_output=skip)
    assert jnp.allclose(out, ref_matched, atol=2e-2, rtol=2e-2), \
        "mismatch vs precision-matched reference"
    assert jnp.allclose(out, ref_f32, atol=8e-2, rtol=5e-2), \
        "mismatch vs f32 reference"

    # Variant 2: no skip + LeakyReLU (exercises the specialized no-skip kernel)
    out2 = conv_block(x, weight, bias, gamma, beta, stride=stride, padding=pad,
                      skip_block_output=None, leaky_relu=True)
    out2 = jax.block_until_ready(out2)
    ref2 = _reference(x, weight, bias, gamma, beta, stride=stride, padding=pad,
                      skip_block_output=None, leaky_relu=True, match_kernel=True)
    assert jnp.allclose(out2, ref2, atol=2e-2, rtol=2e-2), \
        "mismatch vs precision-matched reference (no-skip variant)"

    print("KERNEL_OK")
</pallas_src>

<mosaic_0001>
module attributes {stable_mosaic.version = 11 : i64} {
  func.func @_conv_stats_kernel(%arg0: i32, %arg1: i32, %arg2: memref<8x36xbf16, #tpu.memory_space<vmem>>, %arg3: memref<1x36x256xbf16, #tpu.memory_space<vmem>>, %arg4: memref<1x8x256xbf16, #tpu.memory_space<vmem>>, %arg5: memref<1x8x1xf32, #tpu.memory_space<vmem>>, %arg6: memref<1x8x1xf32, #tpu.memory_space<vmem>>) attributes {dimension_semantics = [#tpu.dimension_semantics<parallel>, #tpu.dimension_semantics<arbitrary>], iteration_bounds = array<i64: 2, 1>, scalar_prefetch = 0 : i64, scratch_operands = 0 : i64, tpu.core_type = #tpu.core_type<tc>, window_params = [{pipeline_mode = #tpu.pipeline_mode<synchronous>, transform_indices = @transform_0, window_bounds = array<i64: 8, 36>}, {transform_indices = @transform_1, window_bounds = array<i64: 1, 36, 256>}, {transform_indices = @transform_2, window_bounds = array<i64: 1, 8, 256>}, {transform_indices = @transform_3, window_bounds = array<i64: 1, 8, 1>}, {transform_indices = @transform_4, window_bounds = array<i64: 1, 8, 1>}]} {
    %c0_i32 = arith.constant 0 : i32
    %0 = arith.cmpi eq, %arg1, %c0_i32 : i32
    %1 = arith.extui %0 : i1 to i32
    %c0_i32_0 = arith.constant 0 : i32
    %2 = arith.cmpi ne, %1, %c0_i32_0 : i32
    scf.if %2 {
      %cst_22 = arith.constant 0.000000e+00 : f32
      %24 = vector.broadcast %cst_22 : f32 to vector<1x8x1xf32>
      %c0_23 = arith.constant 0 : index
      %c0_24 = arith.constant 0 : index
      %c0_25 = arith.constant 0 : index
      %25 = vector.load %arg5[%c0_23, %c0_24, %c0_25] : memref<1x8x1xf32, #tpu.memory_space<vmem>>, vector<1x8x1xf32>
      tpu.vector_store %arg5[%c0_23, %c0_24, %c0_25], %24 {strides = array<i32>} : memref<1x8x1xf32, #tpu.memory_space<vmem>>, vector<1x8x1xf32>,
      %cst_26 = arith.constant 0.000000e+00 : f32
      %26 = vector.broadcast %cst_26 : f32 to vector<1x8x1xf32>
      %c0_27 = arith.constant 0 : index
      %c0_28 = arith.constant 0 : index
      %c0_29 = arith.constant 0 : index
      %27 = vector.load %arg6[%c0_27, %c0_28, %c0_29] : memref<1x8x1xf32, #tpu.memory_space<vmem>>, vector<1x8x1xf32>
      tpu.vector_store %arg6[%c0_27, %c0_28, %c0_29], %26 {strides = array<i32>} : memref<1x8x1xf32, #tpu.memory_space<vmem>>, vector<1x8x1xf32>,
    } else {
    }
    %c0 = arith.constant 0 : index
    %c0_1 = arith.constant 0 : index
    %3 = vector.load %arg2[%c0, %c0_1] : memref<8x36xbf16, #tpu.memory_space<vmem>>, vector<8x36xbf16>
    %c0_2 = arith.constant 0 : index
    %c0_3 = arith.constant 0 : index
    %c0_4 = arith.constant 0 : index
    %4 = vector.load %arg3[%c0_2, %c0_3, %c0_4] : memref<1x36x256xbf16, #tpu.memory_space<vmem>>, vector<1x36x256xbf16>
    %5 = vector.shape_cast %4 : vector<1x36x256xbf16> to vector<36x256xbf16>
    %cst = arith.constant dense<0.000000e+00> : vector<8x256xf32>
    %6 = tpu.matmul %3, %5, %cst {dimension_numbers = #tpu.dot_dimension_numbers<[1], [0], [0], [1], [0, 0, 1, 1], [], []>} : vector<8x36xbf16>, vector<36x256xbf16>, vector<8x256xf32> -> vector<8x256xf32>
    %7 = arith.truncf %6 : vector<8x256xf32> to vector<8x256xbf16>
    %c0_5 = arith.constant 0 : index
    %c0_6 = arith.constant 0 : index
    %c0_7 = arith.constant 0 : index
    %8 = vector.load %arg4[%c0_5, %c0_6, %c0_7] : memref<1x8x256xbf16, #tpu.memory_space<vmem>>, vector<1x8x256xbf16>
    %9 = vector.shape_cast %8 : vector<1x8x256xbf16> to vector<8x256xbf16>
    %10 = vector.shape_cast %7 : vector<8x256xbf16> to vector<1x8x256xbf16>
    tpu.vector_store %arg4[%c0_5, %c0_6, %c0_7], %10 {strides = array<i32>} : memref<1x8x256xbf16, #tpu.memory_space<vmem>>, vector<1x8x256xbf16>,
    %c0_8 = arith.constant 0 : index
    %c0_9 = arith.constant 0 : index
    %c0_10 = arith.constant 0 : index
    %11 = vector.load %arg5[%c0_8, %c0_9, %c0_10] : memref<1x8x1xf32, #tpu.memory_space<vmem>>, vector<1x8x1xf32>
    %cst_11 = arith.constant dense<0.000000e+00> : vector<8xf32>
    %12 = vector.multi_reduction <add>, %6, %cst_11 [1] : vector<8x256xf32> to vector<8xf32>
    %13 = vector.shape_cast %12 : vector<8xf32> to vector<8x1xf32>
    %14 = vector.shape_cast %13 : vector<8x1xf32> to vector<1x8x1xf32>
    %15 = arith.addf %11, %14 : vector<1x8x1xf32>
    %c0_12 = arith.constant 0 : index
    %c0_13 = arith.constant 0 : index
    %c0_14 = arith.constant 0 : index
    %16 = vector.load %arg5[%c0_12, %c0_13, %c0_14] : memref<1x8x1xf32, #tpu.memory_space<vmem>>, vector<1x8x1xf32>
    tpu.vector_store %arg5[%c0_12, %c0_13, %c0_14], %15 {strides = array<i32>} : memref<1x8x1xf32, #tpu.memory_space<vmem>>, vector<1x8x1xf32>,
    %c0_15 = arith.constant 0 : index
    %c0_16 = arith.constant 0 : index
    %c0_17 = arith.constant 0 : index
    %17 = vector.load %arg6[%c0_15, %c0_16, %c0_17] : memref<1x8x1xf32, #tpu.memory_space<vmem>>, vector<1x8x1xf32>
    %18 = arith.mulf %6, %6 : vector<8x256xf32>
    %cst_18 = arith.constant dense<0.000000e+00> : vector<8xf32>
    %19 = vector.multi_reduction <add>, %18, %cst_18 [1] : vector<8x256xf32> to vector<8xf32>
    %20 = vector.shape_cast %19 : vector<8xf32> to vector<8x1xf32>
    %21 = vector.shape_cast %20 : vector<8x1xf32> to vector<1x8x1xf32>
    %22 = arith.addf %17, %21 : vector<1x8x1xf32>
    %c0_19 = arith.constant 0 : index
    %c0_20 = arith.constant 0 : index
    %c0_21 = arith.constant 0 : index
    %23 = vector.load %arg6[%c0_19, %c0_20, %c0_21] : memref<1x8x1xf32, #tpu.memory_space<vmem>>, vector<1x8x1xf32>
    tpu.vector_store %arg6[%c0_19, %c0_20, %c0_21], %22 {strides = array<i32>} : memref<1x8x1xf32, #tpu.memory_space<vmem>>, vector<1x8x1xf32>,
    return
  }
  func.func @transform_0(%arg0: i32, %arg1: i32) -> (i32, i32) {
    %c0_i32 = arith.constant 0 : i32
    %c0_i32_0 = arith.constant 0 : i32
    %c0_i32_1 = arith.constant 0 : i32
    return %c0_i32, %c0_i32_0 : i32, i32
  }
  func.func @transform_1(%arg0: i32, %arg1: i32) -> (i32, i32, i32) {
    %c0_i32 = arith.constant 0 : i32
    %c0_i32_0 = arith.constant 0 : i32
    return %arg0, %c0_i32, %arg1 : i32, i32, i32
  }
  func.func @transform_2(%arg0: i32, %arg1: i32) -> (i32, i32, i32) {
    %c0_i32 = arith.constant 0 : i32
    %c0_i32_0 = arith.constant 0 : i32
    return %arg0, %c0_i32, %arg1 : i32, i32, i32
  }
  func.func @transform_3(%arg0: i32, %arg1: i32) -> (i32, i32, i32) {
    %c0_i32 = arith.constant 0 : i32
    %c0_i32_0 = arith.constant 0 : i32
    %c0_i32_1 = arith.constant 0 : i32
    return %arg0, %c0_i32, %c0_i32_0 : i32, i32, i32
  }
  func.func @transform_4(%arg0: i32, %arg1: i32) -> (i32, i32, i32) {
    %c0_i32 = arith.constant 0 : i32
    %c0_i32_0 = arith.constant 0 : i32
    %c0_i32_1 = arith.constant 0 : i32
    return %arg0, %c0_i32, %c0_i32_0 : i32, i32, i32
  }
}

</mosaic_0001>

<llo_original>
// kernel: tpu_custom_call.1
$region0: #{tpu_custom_call.1}
  #allocation0 [shape = 'u32[]', space=smem, size = 0x4, offset = 0x4, fixed_abs, tag = 'smem constant byte address 0x4 - core index']
  #allocation1 [shape = 'u32[144,128]{1,0:T(1,128)}', space=vmem, size = 0x12000, scoped, tag = 'internal scratch']
  %s0 = inlined_call_operand.vmem [shape: bf16[8,36], index: 0, kind: input, shape index: {}]
  %s1 = inlined_call_operand.vmem [shape: bf16[2,36,256], index: 1, kind: input, shape index: {}]
  %s2 = inlined_call_operand.hbm [shape: bf16[2,8,256], index: 2, kind: output, shape index: {0}]
  %s3 = inlined_call_operand.vmem [shape: f32[2,8,1], index: 3, kind: output, shape index: {1}]
  %s4 = inlined_call_operand.vmem [shape: f32[2,8,1], index: 4, kind: output, shape index: {2}]
  %5 = xla_tuple %s2, %s3, %s4
  %s6 = sld [smem:[#allocation0]]
  $region61: #{tpu_custom_call.1} parent=0
    _
  %s8 = ssub.s32 1, %s6
  %s9 = scalar_select 0, %s8, %s6
  $region1: #{tpu_custom_call.1} parent=0
    #allocation2 [shape = 'u8[8192]{0}', space=vmem, size = 0x2000, scoped, tag = 'output window, operand 0']
    #allocation3 [shape = 's32[2]{0}', space=sflag, size = 0x8, scoped, tag = 'scoped memory for tpu_custom_call.1']
    %10 = vsyncpa [#allocation3], 0
    %s11 = scalar_lea.sflag [#allocation3], 1
    %12 = vsyncpa %s11, 0
    loop: start=0, step=1, limit=4
    $region2: #{tpu_custom_call.1} parent=1 // loop_pre_header
      _
    $region3: #{tpu_custom_call.1} parent=1 // loop_header
      %s14 = sphi 0, %s18
      %p15 = scmp.ge.s32.totalorder %s14, 4
      %s21 = sphi 0, %s33
      %s22 = sphi 0, %s29
      %s23 = sphi 0, %s21
      %s24 = sphi 0, %s22
      %s25 = sphi 0, %s23
      %s26 = sphi 0, %s24
      %s34 = sphi 0, %s34
      %s36 = sphi 0, %s34
      %s37 = sphi 0, %s36
      %s51 = sphi 0, %s37
      %s59 = sphi 0, %s61
      %s62 = sphi 0, %s59
      %s63 = sphi 0, %s62
      %s79 = sphi 0, %s63
      %s87 = sphi 0, %s89
      %s90 = sphi 0, %s87
      %s91 = sphi 0, %s90
      %s107 = sphi 0, %s91
      %s113 = sphi 0, %s115
      %s116 = sphi 0, %s113
      %s117 = sphi 0, %s116
      %s133 = sphi 0, %s117
      %s139 = sphi 0, %s141
      %s142 = sphi 0, %s139
      %s143 = sphi 0, %s142
      %s159 = sphi 0, %s143
    $region4: #{tpu_custom_call.1} parent=1 // loop_header_branch
      %17 = sbr.rel (%p15) target = $region8
    $region5: #{tpu_custom_call.1} parent=1 // loop_body
      %s19 = ssub.s32 %s14, 1
      %s20 = ssub.s32 %s14, 2
      %s27 = sadd.s32 1, %s22
      %p28 = scmp.ge.s32.totalorder %s27, 1
      %s29 = scalar_select %p28, 0, %s27
      %s30 = sadd.s32 1, %s21
      %s31 = scalar_select %p28, %s30, %s21
      %p32 = scmp.ge.s32.totalorder %s31, 2
      %s33 = scalar_select %p32, 0, %s31
      %s35 = sadd.s32 %s34, 1
      %p38 = scmp.eq.s32.totalorder %s14, 1
      %p39 = scmp.ne.s32.totalorder %s34, %s36
      %p40 = scmp.eq.s32.totalorder %s14, 0
      %p41 = por %p39, %p40
      %p42 = scmp.ne.s32.totalorder %s34, %s36
      %p43 = scmp.eq.s32.totalorder %s19, 1
      %p44 = por %p42, %p43
      %p45 = scmp.ne.s32.totalorder %s36, %s37
      %p46 = scmp.eq.s32.totalorder %s19, 0
      %p47 = por %p45, %p46
      %p48 = scmp.ne.s32.totalorder %s36, %s37
      %p49 = scmp.eq.s32.totalorder %s20, 1
      %p50 = por %p48, %p49
      %p52 = scmp.ne.s32.totalorder %s37, %s51
      %p53 = scmp.eq.s32.totalorder %s20, 0
      %p54 = por %p52, %p53
      %s55 = ssub.s32 %s21, %s33
      %s56 = ssub.s32 %s22, %s29
      %s57 = sor.u32 %s55, %s56
      %p58 = scmp.eq.s32.totalorder %s57, 0
      %s60 = sadd.s32 %s59, 1
      %s61 = scalar_select %p58, %s59, %s60
      %p64 = pneg %p58
      %p65 = scmp.eq.s32.totalorder %s14, 1
      %p66 = por %p64, %p65
      %p67 = scmp.ne.s32.totalorder %s59, %s62
      %p68 = scmp.eq.s32.totalorder %s14, 0
      %p69 = por %p67, %p68
      %p70 = scmp.ne.s32.totalorder %s59, %s62
      %p71 = scmp.eq.s32.totalorder %s19, 1
      %p72 = por %p70, %p71
      %p73 = scmp.ne.s32.totalorder %s62, %s63
      %p74 = scmp.eq.s32.totalorder %s19, 0
      %p75 = por %p73, %p74
      %p76 = scmp.ne.s32.totalorder %s62, %s63
      %p77 = scmp.eq.s32.totalorder %s20, 1
      %p78 = por %p76, %p77
      %p80 = scmp.ne.s32.totalorder %s63, %s79
      %p81 = scmp.eq.s32.totalorder %s20, 0
      %p82 = por %p80, %p81
      %s83 = ssub.s32 %s21, %s33
      %s84 = ssub.s32 %s22, %s29
      %s85 = sor.u32 %s83, %s84
      %p86 = scmp.eq.s32.totalorder %s85, 0
      %s88 = sadd.s32 %s87, 1
      %s89 = scalar_select %p86, %s87, %s88
      %p92 = pneg %p86
      %p93 = scmp.eq.s32.totalorder %s14, 1
      %p94 = por %p92, %p93
      %p95 = scmp.ne.s32.totalorder %s87, %s90
      %p96 = scmp.eq.s32.totalorder %s14, 0
      %p97 = por %p95, %p96
      %p98 = scmp.ne.s32.totalorder %s87, %s90
      %p99 = scmp.eq.s32.totalorder %s19, 1
      %p100 = por %p98, %p99
      %p101 = scmp.ne.s32.totalorder %s90, %s91
      %p102 = scmp.eq.s32.totalorder %s19, 0
      %p103 = por %p101, %p102
      %p104 = scmp.ne.s32.totalorder %s90, %s91
      %p105 = scmp.eq.s32.totalorder %s20, 1
      %p106 = por %p104, %p105
      %p108 = scmp.ne.s32.totalorder %s91, %s107
      %p109 = scmp.eq.s32.totalorder %s20, 0
      %p110 = por %p108, %p109
      %s111 = ssub.s32 %s21, %s33
      %p112 = scmp.eq.s32.totalorder %s111, 0
      %s114 = sadd.s32 %s113, 1
      %s115 = scalar_select %p112, %s113, %s114
      %p118 = pneg %p112
      %p119 = scmp.eq.s32.totalorder %s14, 1
      %p120 = por %p118, %p119
      %p121 = scmp.ne.s32.totalorder %s113, %s116
      %p122 = scmp.eq.s32.totalorder %s14, 0
      %p123 = por %p121, %p122
      %p124 = scmp.ne.s32.totalorder %s113, %s116
      %p125 = scmp.eq.s32.totalorder %s19, 1
      %p126 = por %p124, %p125
      %p127 = scmp.ne.s32.totalorder %s116, %s117
      %p128 = scmp.eq.s32.totalorder %s19, 0
      %p129 = por %p127, %p128
      %p130 = scmp.ne.s32.totalorder %s116, %s117
      %p131 = scmp.eq.s32.totalorder %s20, 1
      %p132 = por %p130, %p131
      %p134 = scmp.ne.s32.totalorder %s117, %s133
      %p135 = scmp.eq.s32.totalorder %s20, 0
      %p136 = por %p134, %p135
      %s137 = ssub.s32 %s21, %s33
      %p138 = scmp.eq.s32.totalorder %s137, 0
      %s140 = sadd.s32 %s139, 1
      %s141 = scalar_select %p138, %s139, %s140
      %p144 = pneg %p138
      %p145 = scmp.eq.s32.totalorder %s14, 1
      %p146 = por %p144, %p145
      %p147 = scmp.ne.s32.totalorder %s139, %s142
      %p148 = scmp.eq.s32.totalorder %s14, 0
      %p149 = por %p147, %p148
      %p150 = scmp.ne.s32.totalorder %s139, %s142
      %p151 = scmp.eq.s32.totalorder %s19, 1
      %p152 = por %p150, %p151
      %p153 = scmp.ne.s32.totalorder %s142, %s143
      %p154 = scmp.eq.s32.totalorder %s19, 0
      %p155 = por %p153, %p154
      %p156 = scmp.ne.s32.totalorder %s142, %s143
      %p157 = scmp.eq.s32.totalorder %s20, 1
      %p158 = por %p156, %p157
      %p160 = scmp.ne.s32.totalorder %s143, %s159
      %p161 = scmp.eq.s32.totalorder %s20, 0
      %p162 = por %p160, %p161
      %p163 = scmp.le.s32.totalorder 1, %s14
      %p164 = scmp.lt.s32.totalorder %s14, 3
      %p165 = pnand %p163, %p164
      %p166 = pneg %p165
      // Predicated region
      $region9: #{tpu_custom_call.1} parent=5 // pred_check
        _
      $region10: #{tpu_custom_call.1} parent=5 // pred_check_branch
        %168 = sbr.rel (%p165) target = $region12
      $region11: #{tpu_custom_call.1} parent=5 // pred_region
        %s169 = ssub.s32 %s14, 1
        // Predicated region
        $region13: #{tpu_custom_call.1} parent=11 // pred_check
          %p170 = pneg %p47
        $region14: #{tpu_custom_call.1} parent=11 // pred_check_branch
          %172 = sbr.rel (%p170) target = $region16
        $region15: #{tpu_custom_call.1} parent=11 // pred_region
          _
        $region16: #{tpu_custom_call.1} parent=11 // pred_fallthru
          _
      $region12: #{tpu_custom_call.1} parent=5 // pred_fallthru
        _
      %p173 = scmp.lt.s32.totalorder %s14, 2
      // Predicated region
      $region17: #{tpu_custom_call.1} parent=5 // pred_check
        %p174 = pneg %p173
      $region18: #{tpu_custom_call.1} parent=5 // pred_check_branch
        %176 = sbr.rel (%p174) target = $region20
      $region19: #{tpu_custom_call.1} parent=5 // pred_region
        // Predicated region
        $region21: #{tpu_custom_call.1} parent=19 // pred_check
          %p177 = pneg %p69
        $region22: #{tpu_custom_call.1} parent=19 // pred_check_branch
          %179 = sbr.rel (%p177) target = $region24
        $region23: #{tpu_custom_call.1} parent=19 // pred_region
          %s180 = smul.u32 2, %s22
          %p181 = scmp.lt.s32.totalorder %s21, 1
          %s182 = scalar_select %p181, %s21, 1
          %p183 = scmp.lt.s32.totalorder %s180, 1
          %s184 = scalar_select %p183, %s180, 1
          %s185 = smul.addr %s182, 10
          %s186 = sadd.s32 %s184, %s185
          %s187 = smul.addr %s186, 4
          %s188 = scalar_lea.vmem %s1, %s187
          %s189 = smul.u32 2, %s22
        $region24: #{tpu_custom_call.1} parent=19 // pred_fallthru
          _
      $region20: #{tpu_custom_call.1} parent=5 // pred_fallthru
        _
      %p190 = scmp.le.s32.totalorder 1, %s14
      %p191 = scmp.lt.s32.totalorder %s14, 3
      %p192 = pnand %p190, %p191
      %p193 = pneg %p192
      // Predicated region
      $region25: #{tpu_custom_call.1} parent=5 // pred_check
        _
      $region26: #{tpu_custom_call.1} parent=5 // pred_check_branch
        %195 = sbr.rel (%p192) target = $region28
      $region27: #{tpu_custom_call.1} parent=5 // pred_region
        %s196 = ssub.s32 %s14, 1
        %p197 = pneg %p47
        %p198 = pneg %p44
        %s199 = smul.u32 2, %s24
        %p200 = scmp.lt.s32.totalorder %s23, 1
        %s201 = scalar_select %p200, %s23, 1
        %p202 = scmp.lt.s32.totalorder %s199, 1
        %s203 = scalar_select %p202, %s199, 1
        %s204 = smul.addr %s201, 10
        %s205 = sadd.s32 %s203, %s204
        %s206 = smul.addr %s205, 4
        %s207 = scalar_lea.vmem %s1, %s206
        %p208 = pneg %p75
        %p209 = pneg %p72
        %p210 = pneg %p103
        %p211 = pneg %p100
        %s212 = sand.u32 %s90, 1
        %s213 = scalar_lea.sflag [#allocation3], %s212
        %s214 = sand.u32 %s90, 1
        %s215 = smul.addr %s214, 8
        %s216 = scalar_lea.vmem [#allocation2], %s215
        %p217 = pneg %p129
        %p218 = pneg %p126
        %p219 = scmp.lt.s32.totalorder %s23, 1
        %s220 = scalar_select %p219, %s23, 1
        %s221 = smul.addr %s220, 8
        %s222 = scalar_lea.vmem %s3, %s221
        %p223 = pneg %p155
        %p224 = pneg %p152
        %p225 = scmp.lt.s32.totalorder %s23, 1
        %s226 = scalar_select %p225, %s23, 1
        %s227 = smul.addr %s226, 8
        %s228 = scalar_lea.vmem %s4, %s227
        %s229 = smul.u32 2, %s24
        %p230 = scmp.lt.s32.totalorder %s23, 1
        %s231 = scalar_select %p230, %s23, 1
        %p232 = scmp.lt.s32.totalorder %s229, 1
        %s233 = scalar_select %p232, %s229, 1
        %s234 = smul.addr %s231, 10
        %s235 = sadd.s32 %s233, %s234
        %s236 = smul.addr %s235, 4
        %s237 = scalar_lea.vmem %s1, %s236
        %s238 = smul.u32 2, %s24
        %s239 = smul.u32 2, %s24
        %p240 = scmp.lt.s32.totalorder %s23, 1
        %s241 = scalar_select %p240, %s23, 1
        %s242 = smul.addr %s241, 8
        %s243 = scalar_lea.vmem %s3, %s242
        %p244 = scmp.lt.s32.totalorder %s23, 1
        %s245 = scalar_select %p244, %s23, 1
        %s246 = smul.addr %s245, 8
        %s247 = scalar_lea.vmem %s4, %s246
        %p249 = scmp.eq.s32.totalorder %s24, 0
        // Predicated region
        $region29: #{tpu_custom_call.1} parent=27 // pred_check
          %p250 = pneg %p249
        $region30: #{tpu_custom_call.1} parent=27 // pred_check_branch
          %252 = sbr.rel (%p250) target = $region32
        $region31: #{tpu_custom_call.1} parent=27 // pred_region
          %vm253 = vcmask 7168
          %254 = vst.msk [vmem:[%s243] sm:$0xff] %vm253, 0.0
          %255 = vst.msk [vmem:[%s247] sm:$0xff] %vm253, 0.0
        $region32: #{tpu_custom_call.1} parent=27 // pred_fallthru
          _
        %v256 = vld [vmem:[%s0] sm:$0xf]
        %v257 = vld [vmem:[%s237] sm:$0xff]
        %v258 = vld [vmem:[%s237 + $0x8] sm:$0xff]
        %v259 = vld [vmem:[%s237 + $0x10] sm:$0xff]
        %v260 = vld [vmem:[%s237 + $0x18] sm:$0xff]
        %v261 = vld [vmem:[%s237 + $0x20] sm:$0x33]
        %v267 = vunpack.c.l.b16 %v257
        %v268 = vunpack.c.h.b16 %v257
        %v269 = vunpack.c.l.b16 %v258
        %v270 = vunpack.c.h.b16 %v258
        %v271 = vunpack.c.l.b16 %v259
        %v272 = vunpack.c.h.b16 %v259
        %v273 = vunpack.c.l.b16 %v260
        %v274 = vunpack.c.h.b16 %v260
        %v275 = vunpack.c.l.b16 %v261
        %v276 = vunpack.c.h.b16 %v261
        %v277 = vpack.c.b16 %v269, %v267
        %v278 = vpack.c.b16 %v270, %v268
        %v279 = vpack.c.b16 %v273, %v271
        %v280 = vpack.c.b16 %v274, %v272
        %v281 = vpack.c.b16 %v275, %v275
        %v282 = vpack.c.b16 %v276, %v276
        %vm287 = vcmask 293888
        %v289 = vsel %vm287, %v256, 0
        %vm291 = vcmask 1041408
        %v293 = vsel %vm291, %v281, 0
        %v296 = vsel %vm291, %v282, 0
        %298 = vmatprep.subr.bf16.mxu0 0
        %299 = vmatpush1.bf16.msra.mxu0 0
        %300 = vmatprep.subr.bf16.mxu0 0
        %301 = vmatpush1.bf16.msra.mxu0 0
        %302 = vmatprep.subr.bf16.mxu0 0
        %303 = vmatpush1.bf16.msra.mxu0 0
        %304 = vmatprep.subr.bf16.mxu0 0
        %305 = vmatpush1.bf16.msra.mxu0 0
        %306 = vmatprep.subr.bf16.mxu0 0
        %307 = vmatpush1.bf16.msra.mxu0 0
        %308 = vmatprep.subr.bf16.mxu0 %v296
        %309 = vmatpush1.bf16.msra.mxu0 %v293
        %310 = vmatprep.subr.bf16.mxu0 %v280
        %311 = vmatpush1.bf16.msra.mxu0 %v279
        %312 = vmatprep.subr.bf16.mxu0 %v278
        %313 = vmatpush1.bf16.msra.mxu0 %v277
        %314 = vmatprep.subr.bf16.mxu0 0
        %315 = vmatpush2.bf16.msra.mxu0 0
        %316 = vmatprep.subr.bf16.mxu0 0
        %317 = vmatpush2.bf16.msra.mxu0 0
        %318 = vmatprep.subr.bf16.mxu0 0
        %319 = vmatpush2.bf16.msra.mxu0 0
        %320 = vmatprep.subr.bf16.mxu0 0
        %321 = vmatpush2.bf16.msra.mxu0 0
        %322 = vmatprep.subr.bf16.mxu0 0
        %323 = vmatpush2.bf16.msra.mxu0 0
        %324 = vmatprep.subr.bf16.mxu0 0
        %325 = vmatpush2.bf16.msra.mxu0 0
        %326 = vmatprep.subr.bf16.mxu0 0
        %327 = vmatpush2.bf16.msra.mxu0 0
        %328 = vmatprep.subr.bf16.mxu0 0
        %329 = vmatpush2.bf16.msra.mxu0 0
        %330 = vmatprep.mubr.bf16.mxu0 0
        %331 = vmatmul.mubr.bf16.gmra.mxu0 %v289
        %v332 = vpop.f32.mrf.mxu0
        %v333 = vadd.f32 0.0, %v332
        %v334 = vpop.f32.mrf.mxu0
        %v335 = vadd.f32 0.0, %v334
        %v336 = vpop.f32.mrf.mxu0
        %v337 = vpop.f32.mrf.mxu0
        %338 = vdwg.mxu0
        %v339 = vpack.c.bf16 %v333, %v333
        %v340 = vpack.c.bf16 %v335, %v335
        %v343 = vunpack.c.l.b16 %v339
        %v344 = vunpack.c.l.b16 %v340
        %v345 = vpack.c.b16 %v344, %v343
        %347 = vst [vmem:[%s216] sm:$0xff] %v345
        %v348 = vld [vmem:[%s243] sm:$0xff]
        %v349 = vadd.f32 %v333, %v335
        %350 = vadd.xlane.f32.xlu0 %v349
        %v351 = vpop.xlane.xlu0 %350
        %v352 = vadd.f32 %v348, %v351
        %vm353 = vcmask 7168
        %354 = vst.msk [vmem:[%s243] sm:$0xff] %vm353, %v352
        %v355 = vld [vmem:[%s247] sm:$0xff]
        %v356 = vmul.f32 %v333, %v333
        %v357 = vmul.f32 %v335, %v335
        %v358 = vadd.f32 %v356, %v357
        %359 = vadd.xlane.f32.xlu0 %v358
        %v360 = vpop.xlane.xlu0 %359
        %v361 = vadd.f32 %v355, %v360
        %362 = vst.msk [vmem:[%s247] sm:$0xff] %vm353, %v361
        %s363 = sand.u32 %s90, 1
        %s364 = scalar_lea.sflag [#allocation3], %s363
        %s365 = sand.u32 %s90, 1
        %s366 = smul.addr %s365, 8
        %s367 = scalar_lea.vmem [#allocation2], %s366
        %p368 = scmp.lt.s32.totalorder %s23, 1
        %s369 = scalar_select %p368, %s23, 1
        %s370 = smul.addr %s369, 8
        %s371 = scalar_lea.vmem %s3, %s370
        %p372 = scmp.lt.s32.totalorder %s23, 1
        %s373 = scalar_select %p372, %s23, 1
        %s374 = smul.addr %s373, 8
        %s375 = scalar_lea.vmem %s4, %s374
        // Predicated region
        $region33: #{tpu_custom_call.1} parent=27 // pred_check
          %p376 = pneg %p100
        $region34: #{tpu_custom_call.1} parent=27 // pred_check_branch
          %378 = sbr.rel (%p376) target = $region36
        $region35: #{tpu_custom_call.1} parent=27 // pred_region
          %s379 = smul.u32 2, %s24
          %s381 = ssub.s32 128, 128
          %382 = vsyncadd %s364, %s381
          %s383 = smul.addr %s23, 2
          %s384 = sadd.s32 %s379, %s383
          %s385 = smul.addr %s384, 64
          %s386 = scalar_lea.hbm %s2, %s385
          %s388 = sshll.u32 %s367, 4
          %s389 = int_to_ptr.vmem [resolvable:$true] %s388
          %391 = dma.vmem_to_hbm [thread:$0]  %s389, 128, %s386, %s364
        $region36: #{tpu_custom_call.1} parent=27 // pred_fallthru
          _
        // Predicated region
        $region37: #{tpu_custom_call.1} parent=27 // pred_check
          %p392 = pneg %p126
        $region38: #{tpu_custom_call.1} parent=27 // pred_check_branch
          %394 = sbr.rel (%p392) target = $region40
        $region39: #{tpu_custom_call.1} parent=27 // pred_region
          _
        $region40: #{tpu_custom_call.1} parent=27 // pred_fallthru
          _
        // Predicated region
        $region41: #{tpu_custom_call.1} parent=27 // pred_check
          %p395 = pneg %p152
        $region42: #{tpu_custom_call.1} parent=27 // pred_check_branch
          %397 = sbr.rel (%p395) target = $region44
        $region43: #{tpu_custom_call.1} parent=27 // pred_region
          _
        $region44: #{tpu_custom_call.1} parent=27 // pred_fallthru
          _
      $region28: #{tpu_custom_call.1} parent=5 // pred_fallthru
        _
      %p398 = scmp.le.s32.totalorder 2, %s14
      // Predicated region
      $region45: #{tpu_custom_call.1} parent=5 // pred_check
        %p399 = pneg %p398
      $region46: #{tpu_custom_call.1} parent=5 // pred_check_branch
        %401 = sbr.rel (%p399) target = $region48
      $region47: #{tpu_custom_call.1} parent=5 // pred_region
        %s402 = ssub.s32 %s14, 2
        // Predicated region
        $region49: #{tpu_custom_call.1} parent=47 // pred_check
          %p403 = pneg %p106
        $region50: #{tpu_custom_call.1} parent=47 // pred_check_branch
          %405 = sbr.rel (%p403) target = $region52
        $region51: #{tpu_custom_call.1} parent=47 // pred_region
          %s406 = sand.u32 %s91, 1
          %s407 = scalar_lea.sflag [#allocation3], %s406
          %s408 = sand.u32 %s91, 1
          %s409 = smul.addr %s408, 8
          %s410 = scalar_lea.vmem [#allocation2], %s409
          %411 = dma.done %s407, 128
        $region52: #{tpu_custom_call.1} parent=47 // pred_fallthru
          _
        // Predicated region
        $region53: #{tpu_custom_call.1} parent=47 // pred_check
          %p412 = pneg %p132
        $region54: #{tpu_custom_call.1} parent=47 // pred_check_branch
          %414 = sbr.rel (%p412) target = $region56
        $region55: #{tpu_custom_call.1} parent=47 // pred_region
          %p415 = scmp.lt.s32.totalorder %s25, 1
          %s416 = scalar_select %p415, %s25, 1
          %s417 = smul.addr %s416, 8
          %s418 = scalar_lea.vmem %s3, %s417
        $region56: #{tpu_custom_call.1} parent=47 // pred_fallthru
          _
        // Predicated region
        $region57: #{tpu_custom_call.1} parent=47 // pred_check
          %p419 = pneg %p158
        $region58: #{tpu_custom_call.1} parent=47 // pred_check_branch
          %421 = sbr.rel (%p419) target = $region60
        $region59: #{tpu_custom_call.1} parent=47 // pred_region
          %p422 = scmp.lt.s32.totalorder %s25, 1
          %s423 = scalar_select %p422, %s25, 1
          %s424 = smul.addr %s423, 8
          %s425 = scalar_lea.vmem %s4, %s424
        $region60: #{tpu_custom_call.1} parent=47 // pred_fallthru
          _
      $region48: #{tpu_custom_call.1} parent=5 // pred_fallthru
        _
    $region6: #{tpu_custom_call.1} parent=1 // loop_footer
      %s18 = sadd.s32 1, %s14
    $region7: #{tpu_custom_call.1} parent=1 // loop_footer_branch
      %13 = sbr.rel target = $region3
    $region8: #{tpu_custom_call.1} parent=1 // loop_exit
      _
    %426 = vsyncpa [#allocation3], 1
    %s427 = scalar_lea.sflag [#allocation3], 1
    %428 = vsyncpa %s427, 1

</llo_original>
